<compile_context>
chip_gen: v5e
topology: v5e:2x2
jax: 0.10.0
libtpu: 0.0.40
codegen_flags: <defaults>
</compile_context>

<pallas_src>
import functools

import jax
import jax.numpy as jnp
import numpy as np
from jax import lax
from jax.experimental import pallas as pl
from jax.experimental.pallas import tpu as pltpu

_MIN_FLOAT = 1e-6
_MIB = 1024 * 1024


def _make_kernel(*, margin, inv_num_pairs, precision, two_preds):
    # bf16 MXU operands: keep an exact f32 p*log(p) accumulator (the diag(C)
    # shortcut would carry the bf16 quantization error into the 'same' branch).
    use_plogp_scratch = precision != "f32"

    def kernel(*refs):
        if two_preds:
            (lab_row_ref, lab_col_ref, preds_blk_ref, preds_full_ref,
             out_ref, *scratch) = refs
        else:
            lab_row_ref, lab_col_ref, preds_full_ref, out_ref, *scratch = refs
            preds_blk_ref = preds_full_ref
        c_acc = scratch[0]
        plogp_acc = scratch[1] if use_plogp_scratch else None

        i = pl.program_id(0)          # row-block index (parallel axis)
        k = pl.program_id(1)          # class-dim tile index (reduction axis)

        @pl.when(k == 0)
        def _init():
            c_acc[...] = jnp.zeros_like(c_acc)
            if use_plogp_scratch:
                plogp_acc[...] = jnp.zeros_like(plogp_acc)

        # Single EUP log pass over the full-width tile (lpc is the MXU operand).
        p_full = preds_full_ref[...].astype(jnp.float32)          # (B, tk)
        lpc_full = jnp.log(jnp.maximum(p_full, _MIN_FLOAT))       # log(clamp(p))

        if two_preds:
            p_blk = preds_blk_ref[...].astype(jnp.float32)        # (Bb, tk)
        else:
            p_blk = p_full

        if use_plogp_scratch:
            if two_preds:
                lpc_blk = jnp.log(jnp.maximum(p_blk, _MIN_FLOAT))
            else:
                lpc_blk = lpc_full
            plogp_acc[...] += jnp.sum(p_blk * lpc_blk, axis=1, keepdims=True)

        # C[a, b] += sum_n p[a, n] * log(clamp(p[b, n]))   (MXU, f32 accumulate)
        dims = (((1,), (1,)), ((), ()))
        if precision == "f32":
            c_acc[...] += lax.dot_general(p_blk, lpc_full, dims,
                                          preferred_element_type=jnp.float32)
        elif precision == "bf16":
            c_acc[...] += lax.dot_general(p_blk.astype(jnp.bfloat16),
                                          lpc_full.astype(jnp.bfloat16), dims,
                                          preferred_element_type=jnp.float32)
        else:  # "bf16_hilo": hi/lo split of lpc -> two bf16 matmuls
            a_op = p_blk.astype(jnp.bfloat16)
            b_hi = lpc_full.astype(jnp.bfloat16)
            b_lo = (lpc_full - b_hi.astype(jnp.float32)).astype(jnp.bfloat16)
            c_acc[...] += (
                lax.dot_general(a_op, b_hi, dims, preferred_element_type=jnp.float32)
                + lax.dot_general(a_op, b_lo, dims, preferred_element_type=jnp.float32))

        @pl.when(k == pl.num_programs(1) - 1)
        def _finalize():
            bb, bf = c_acc.shape                               # (Bb, B)
            c = c_acc[...]
            row = lax.broadcasted_iota(jnp.int32, (bb, bf), 0)
            col = lax.broadcasted_iota(jnp.int32, (bb, bf), 1)
            diag = col == row + i * bb        # absolute row index of local row

            if use_plogp_scratch:
                plogp = plogp_acc[...]                         # exact f32 path
            else:
                # plogp[a] == C[a, a]: reuse the MXU diagonal (one-time masked
                # reduce in the epilogue instead of a per-step VPU+XLU pass).
                plogp = jnp.sum(jnp.where(diag, c, 0.0), axis=1, keepdims=True)

            # term[a,b] = sum_n p[a,n]*(log clamp(p[a,n]) - log clamp(p[b,n]))
            term = plogp - c                                   # (Bb, B)
            same = lab_row_ref[...] == lab_col_ref[...]        # (Bb, B)
            # Same-label pairs: symmetric-mask sum of KL(p_b||clamp(p_a)) equals
            # the sum of term over the same mask.  Different-label: hinge.
            contrib = jnp.where(same, term, jnp.maximum(margin - term, 0.0))
            if use_plogp_scratch:
                # term[a,a] not exactly 0 with bf16 operands -> mask diagonal.
                contrib = jnp.where(diag, 0.0, contrib)
            # f32 path: term[a,a] == 0 exactly and labels[a] == labels[a], so
            # the diagonal lands in the 'same' branch and contributes nothing.
            out_ref[0, 0] = jnp.sum(contrib) * inv_num_pairs

    return kernel


def _vmem_budget_bytes():
    try:
        cap = int(pltpu.get_tpu_info().vmem_capacity_bytes)
        if cap > 0:
            return (cap * 3) // 4          # leave headroom for Mosaic internals
    except Exception:
        pass
    return 48 * _MIB                       # conservative: 0.75 x v7x's 64 MiB


def _vmem_estimate(B, Bb, tk, itemsize, two_preds):
    est = 2 * Bb * tk * itemsize           # row-block preds, double-buffered
    if two_preds:
        est += 2 * B * tk * itemsize       # full-width lpc operand stream
    est += Bb * B * 4 + 8 * 128 * 4        # C accumulator (+ padded plogp)
    est += 4 * B * tk * 4                  # in-kernel f32 temporaries / casts
    est += 2 * _MIB                        # misc headroom
    return est


def _choose_tk(B, Bb, N, itemsize, two_preds, budget):
    # Largest lane-aligned (multiple-of-128) tile dividing N that fits the VMEM
    # budget: bigger k-tiles amortize the ~0.35us/step pipeline overhead and
    # the accumulator read-modify-write.  Ragged N -> full-extent block.
    candidates = [c for c in (8192, 4096, 2048, 1024, 512, 256, 128) if N % c == 0]
    for tk in candidates:
        if _vmem_estimate(B, Bb, tk, itemsize, two_preds) <= budget:
            return tk
    if candidates:
        return candidates[-1]
    return N


def pairwise_kl_loss(preds, labels, margin=2.0, precision="f32", num_row_blocks=1):
    """Forward pass of the reference pairwise KL loss.

    preds:  (B, N) probability predictions, any float dtype (cast to f32
            in-kernel; feeding bf16 preds halves the dominant HBM stream when
            the tolerance budget allows).
    labels: (B, N); only labels[:, 0] is compared, matching the PyTorch module.
    precision: "f32" (default), "bf16" or "bf16_hilo" MXU operands for the
            cross term (bf16 modes keep an exact f32 p*log p accumulator).
    num_row_blocks: leading 'parallel' grid axis over a-row blocks (set to 2 on
            dual-TensorCore chips such as v7x when MXU-bound; preds HBM reads
            grow ~(1+nb)x, so skip for small, memory-bound B).
    """
    assert precision in ("f32", "bf16", "bf16_hilo")
    B, N = preds.shape
    if B < 2:
        # num_pairs == 0: the reference's pair loops run zero times.
        return jnp.zeros((1,), dtype=jnp.float32)

    nb = int(num_row_blocks)
    if nb < 1 or B % nb != 0 or (nb > 1 and (B // nb) % 8 != 0):
        nb = 1                 # row block must keep the (8, 128) sublane tiling
    Bb = B // nb
    two_preds = nb > 1

    lab = labels[:, 0:1].astype(jnp.float32)     # torch does labels.float()
    lab_row = lab                                # (B, 1) -> labels[a, 0]
    lab_col = lab.reshape(1, B)                  # (1, B) -> labels[b, 0]

    itemsize = preds.dtype.itemsize
    budget = _vmem_budget_bytes()
    tk = _choose_tk(B, Bb, N, itemsize, two_preds, budget)
    kt = N // tk
    num_pairs = B * (B - 1) / 2.0

    kernel = _make_kernel(margin=float(margin),
                          inv_num_pairs=float(1.0 / num_pairs),
                          precision=precision, two_preds=two_preds)

    in_specs = [
        pl.BlockSpec((Bb, 1), lambda i, k: (i, 0)),      # lab_row row block
        pl.BlockSpec((1, B), lambda i, k: (0, 0)),       # lab_col (resident)
    ]
    operands = [lab_row, lab_col]
    if two_preds:
        in_specs += [
            pl.BlockSpec((Bb, tk), lambda i, k: (i, k)), # p operand (row block)
            pl.BlockSpec((B, tk), lambda i, k: (0, k)),  # lpc operand (full width)
        ]
        operands += [preds, preds]
    else:
        in_specs += [pl.BlockSpec((B, tk), lambda i, k: (0, k))]
        operands += [preds]

    scratch_shapes = [pltpu.VMEM((Bb, B), jnp.float32)]          # C accumulator
    if precision != "f32":
        scratch_shapes.append(pltpu.VMEM((Bb, 1), jnp.float32))  # exact f32 plogp

    est = _vmem_estimate(B, Bb, tk, itemsize, two_preds)
    vmem_limit = int(min(budget + 2 * _MIB, max(2 * est, 32 * _MIB)))

    n_matmuls = 2 if precision == "bf16_hilo" else 1
    cost = pl.CostEstimate(
        flops=int(2 * B * B * N * n_matmuls + 4 * B * N * nb + 4 * B * B),
        transcendentals=int(B * N * nb),
        bytes_accessed=int(B * N * itemsize * ((1 + nb) if two_preds else 1)
                           + 2 * B * 4 + nb * 4),
    )

    out = pl.pallas_call(
        kernel,
        out_shape=jax.ShapeDtypeStruct((nb, 1), jnp.float32),
        grid_spec=pltpu.PrefetchScalarGridSpec(
            num_scalar_prefetch=0,
            grid=(nb, kt),
            in_specs=in_specs,
            out_specs=pl.BlockSpec((1, 1), lambda i, k: (i, 0),
                                   memory_space=pltpu.MemorySpace.SMEM),
            scratch_shapes=scratch_shapes),
        compiler_params=pltpu.CompilerParams(
            dimension_semantics=("parallel", "arbitrary"),
            vmem_limit_bytes=vmem_limit),
        cost_estimate=cost,
    )(*operands)
    # Each row-block partial already carries the 1/num_pairs factor.
    return jnp.sum(out).reshape(1)   # matches torch.zeros(1) result shape


def _reference(preds, labels, margin=2.0):
    preds = np.asarray(preds, dtype=np.float32)
    labels = np.asarray(labels, dtype=np.float32)
    B = preds.shape[0]
    eps = 1e-6
    loss = 0.0
    for a in range(B):
        for b in range(B):
            if a == b:
                continue
            if labels[a, 0] == labels[b, 0]:
                pa = np.clip(preds[a], eps, None)
                pb = preds[b]
                # xlogy semantics of F.kl_div (0 * log 0 = 0)
                plogp = np.where(pb > 0, pb * np.log(np.where(pb > 0, pb, 1.0)), 0.0)
                loss += float(np.sum(plogp - pb * np.log(pa)))
            else:
                kl = float(np.sum(preds[a] * (np.log(np.clip(preds[a], eps, None))
                                              - np.log(np.clip(preds[b], eps, None)))))
                if kl < margin:
                    loss += margin - kl
    return np.asarray([loss / (B * (B - 1) / 2.0)], dtype=np.float32)


if __name__ == "__main__":
    key = jax.random.PRNGKey(0)

    # Case 1: small ragged N (full-extent k block), default f32 / diag(C) path.
    B, N = 8, 16
    k1, k2, key = jax.random.split(key, 3)
    preds = jax.nn.softmax(jax.random.normal(k1, (B, N), dtype=jnp.float32), axis=-1)
    class_ids = jax.random.randint(k2, (B,), 0, 3)
    labels = jnp.zeros((B, N), jnp.float32).at[:, 0].set(class_ids.astype(jnp.float32))
    loss = jax.block_until_ready(pairwise_kl_loss(preds, labels, margin=2.0))
    ref = _reference(preds, labels, margin=2.0)
    assert loss.shape == (1,)
    assert np.allclose(np.asarray(loss), ref, rtol=1e-4, atol=1e-4), (loss, ref)

    # Case 2: lane-aligned N with the 2-row-block 'parallel' axis (v7x megacore path).
    B2, N2 = 16, 256
    k3, k4, key = jax.random.split(key, 3)
    preds2 = jax.nn.softmax(jax.random.normal(k3, (B2, N2), dtype=jnp.float32), axis=-1)
    cid2 = jax.random.randint(k4, (B2,), 0, 4)
    labels2 = jnp.zeros((B2, N2), jnp.float32).at[:, 0].set(cid2.astype(jnp.float32))
    ref2 = _reference(preds2, labels2, margin=2.0)
    loss2 = jax.block_until_ready(
        pairwise_kl_loss(preds2, labels2, margin=2.0, num_row_blocks=2))
    assert np.allclose(np.asarray(loss2), ref2, rtol=1e-4, atol=1e-4), (loss2, ref2)

    # Case 3: bf16 hi/lo MXU operands (f32 plogp path; looser tolerance by design).
    loss3 = jax.block_until_ready(
        pairwise_kl_loss(preds2, labels2, margin=2.0, precision="bf16_hilo"))
    assert np.allclose(np.asarray(loss3), ref2, rtol=5e-2, atol=5e-2), (loss3, ref2)

    print("KERNEL_OK")
</pallas_src>

<mosaic_0001>
module attributes {stable_mosaic.version = 11 : i64} {
  func.func @kernel(%arg0: i32, %arg1: i32, %arg2: memref<8x1xf32, #tpu.memory_space<vmem>>, %arg3: memref<1x8xf32, #tpu.memory_space<vmem>>, %arg4: memref<8x16xf32, #tpu.memory_space<vmem>>, %arg5: memref<1x1xf32, #tpu.memory_space<smem>>, %arg6: memref<8x8xf32, #tpu.memory_space<vmem>>) attributes {dimension_semantics = [#tpu.dimension_semantics<parallel>, #tpu.dimension_semantics<arbitrary>], iteration_bounds = array<i64: 1, 1>, scalar_prefetch = 0 : i64, scratch_operands = 1 : i64, tpu.core_type = #tpu.core_type<tc>, window_params = [{transform_indices = @transform_0, window_bounds = array<i64: 8, 1>}, {pipeline_mode = #tpu.pipeline_mode<synchronous>, transform_indices = @transform_1, window_bounds = array<i64: 1, 8>}, {transform_indices = @transform_2, window_bounds = array<i64: 8, 16>}, {transform_indices = @transform_3, window_bounds = array<i64: 1, 1>}]} {
    %c0_i32 = arith.constant 0 : i32
    %0 = arith.cmpi eq, %arg1, %c0_i32 : i32
    %1 = arith.extui %0 : i1 to i32
    %c0_i32_0 = arith.constant 0 : i32
    %2 = arith.cmpi ne, %1, %c0_i32_0 : i32
    scf.if %2 {
      %cst_9 = arith.constant 0.000000e+00 : f32
      %14 = vector.broadcast %cst_9 : f32 to vector<8x8xf32>
      %c0_10 = arith.constant 0 : index
      %c0_11 = arith.constant 0 : index
      %15 = vector.load %arg6[%c0_10, %c0_11] : memref<8x8xf32, #tpu.memory_space<vmem>>, vector<8x8xf32>
      tpu.vector_store %arg6[%c0_10, %c0_11], %14 {strides = array<i32>} : memref<8x8xf32, #tpu.memory_space<vmem>>, vector<8x8xf32>,
    } else {
    }
    %c0 = arith.constant 0 : index
    %c0_1 = arith.constant 0 : index
    %3 = vector.load %arg4[%c0, %c0_1] : memref<8x16xf32, #tpu.memory_space<vmem>>, vector<8x16xf32>
    %cst = arith.constant 9.99999997E-7 : f32
    %4 = vector.broadcast %cst : f32 to vector<8x16xf32>
    %5 = arith.maximumf %3, %4 : vector<8x16xf32>
    %6 = math.log %5 : vector<8x16xf32>
    %c0_2 = arith.constant 0 : index
    %c0_3 = arith.constant 0 : index
    %7 = vector.load %arg6[%c0_2, %c0_3] : memref<8x8xf32, #tpu.memory_space<vmem>>, vector<8x8xf32>
    %cst_4 = arith.constant dense<0.000000e+00> : vector<8x8xf32>
    %8 = tpu.matmul %3, %6, %cst_4 {dimension_numbers = #tpu.dot_dimension_numbers<[1], [1], [0], [0], [0, 0, 1, 0], [], []>} : vector<8x16xf32>, vector<8x16xf32>, vector<8x8xf32> -> vector<8x8xf32>
    %9 = arith.addf %7, %8 : vector<8x8xf32>
    %c0_5 = arith.constant 0 : index
    %c0_6 = arith.constant 0 : index
    %10 = vector.load %arg6[%c0_5, %c0_6] : memref<8x8xf32, #tpu.memory_space<vmem>>, vector<8x8xf32>
    tpu.vector_store %arg6[%c0_5, %c0_6], %9 {strides = array<i32>} : memref<8x8xf32, #tpu.memory_space<vmem>>, vector<8x8xf32>,
    %c0_i32_7 = arith.constant 0 : i32
    %11 = arith.cmpi eq, %arg1, %c0_i32_7 : i32
    %12 = arith.extui %11 : i1 to i32
    %c0_i32_8 = arith.constant 0 : i32
    %13 = arith.cmpi ne, %12, %c0_i32_8 : i32
    scf.if %13 {
      %c0_9 = arith.constant 0 : index
      %c0_10 = arith.constant 0 : index
      %14 = vector.load %arg6[%c0_9, %c0_10] : memref<8x8xf32, #tpu.memory_space<vmem>>, vector<8x8xf32>
      %15 = tpu.iota {dimensions = array<i32: 0>} : vector<8x8xi32>
      %16 = tpu.iota {dimensions = array<i32: 1>} : vector<8x8xi32>
      %c8_i32 = arith.constant 8 : i32
      %17 = arith.muli %arg0, %c8_i32 : i32
      %18 = vector.broadcast %17 : i32 to vector<8x8xi32>
      %19 = arith.addi %15, %18 : vector<8x8xi32>
      %20 = arith.cmpi eq, %16, %19 : vector<8x8xi32>
      %cst_11 = arith.constant 0.000000e+00 : f32
      %21 = vector.broadcast %cst_11 : f32 to vector<8x8xf32>
      %22 = arith.select %20, %14, %21 : vector<8x8xi1>, vector<8x8xf32>
      %cst_12 = arith.constant dense<0.000000e+00> : vector<8xf32>
      %23 = vector.multi_reduction <add>, %22, %cst_12 [1] : vector<8x8xf32> to vector<8xf32>
      %24 = vector.shape_cast %23 : vector<8xf32> to vector<8x1xf32>
      %25 = vector.broadcast %24 : vector<8x1xf32> to vector<8x8xf32>
      %26 = arith.subf %25, %14 : vector<8x8xf32>
      %c0_13 = arith.constant 0 : index
      %c0_14 = arith.constant 0 : index
      %27 = vector.load %arg2[%c0_13, %c0_14] : memref<8x1xf32, #tpu.memory_space<vmem>>, vector<8x1xf32>
      %c0_15 = arith.constant 0 : index
      %c0_16 = arith.constant 0 : index
      %28 = vector.load %arg3[%c0_15, %c0_16] : memref<1x8xf32, #tpu.memory_space<vmem>>, vector<1x8xf32>
      %29 = vector.broadcast %27 : vector<8x1xf32> to vector<8x8xf32>
      %30 = vector.broadcast %28 : vector<1x8xf32> to vector<8x8xf32>
      %31 = arith.cmpf oeq, %29, %30 : vector<8x8xf32>
      %cst_17 = arith.constant 2.000000e+00 : f32
      %32 = vector.broadcast %cst_17 : f32 to vector<8x8xf32>
      %33 = arith.subf %32, %26 : vector<8x8xf32>
      %cst_18 = arith.constant 0.000000e+00 : f32
      %34 = vector.broadcast %cst_18 : f32 to vector<8x8xf32>
      %35 = arith.maximumf %33, %34 : vector<8x8xf32>
      %36 = arith.select %31, %26, %35 : vector<8x8xi1>, vector<8x8xf32>
      %37 = vector.shape_cast %36 : vector<8x8xf32> to vector<1x8x8xf32>
      %cst_19 = arith.constant dense<0.000000e+00> : vector<1xf32>
      %38 = vector.multi_reduction <add>, %37, %cst_19 [1, 2] : vector<1x8x8xf32> to vector<1xf32>
      %39 = vector.shape_cast %38 : vector<1xf32> to vector<1x1x1xf32>
      %40 = vector.extract %39[0, 0, 0] : f32 from vector<1x1x1xf32>
      %cst_20 = arith.constant 0.0357142873 : f32
      %41 = arith.mulf %40, %cst_20 : f32
      %c0_21 = arith.constant 0 : index
      %c0_22 = arith.constant 0 : index
      %42 = memref.load %arg5[%c0_21, %c0_22] : memref<1x1xf32, #tpu.memory_space<smem>>
      memref.store %41, %arg5[%c0_21, %c0_22] : memref<1x1xf32, #tpu.memory_space<smem>>
    } else {
    }
    return
  }
  func.func @transform_0(%arg0: i32, %arg1: i32) -> (i32, i32) {
    %c0_i32 = arith.constant 0 : i32
    %c0_i32_0 = arith.constant 0 : i32
    return %arg0, %c0_i32 : i32, i32
  }
  func.func @transform_1(%arg0: i32, %arg1: i32) -> (i32, i32) {
    %c0_i32 = arith.constant 0 : i32
    %c0_i32_0 = arith.constant 0 : i32
    %c0_i32_1 = arith.constant 0 : i32
    return %c0_i32, %c0_i32_0 : i32, i32
  }
  func.func @transform_2(%arg0: i32, %arg1: i32) -> (i32, i32) {
    %c0_i32 = arith.constant 0 : i32
    %c0_i32_0 = arith.constant 0 : i32
    return %c0_i32, %arg1 : i32, i32
  }
  func.func @transform_3(%arg0: i32, %arg1: i32) -> (i32, i32) {
    %c0_i32 = arith.constant 0 : i32
    %c0_i32_0 = arith.constant 0 : i32
    return %arg0, %c0_i32 : i32, i32
  }
}

</mosaic_0001>

<llo_original>
// kernel: tpu_custom_call.1
$region0: #{tpu_custom_call.1}
  #allocation0 [shape = 'u32[]', space=smem, size = 0x4, offset = 0x4, fixed_abs, tag = 'smem constant byte address 0x4 - core index']
  #allocation1 [shape = 'u32[72,128]{1,0:T(1,128)}', space=vmem, size = 0x9000, scoped, tag = 'internal scratch']
  #allocation2 [shape = 'f32[8,8]{1,0:T(8,128)}', space=vmem, size = 0x1000, scoped, tag = 'scratch operand']
  %s0 = inlined_call_operand.vmem [shape: f32[8,1], index: 0, kind: input, shape index: {}]
  %s1 = inlined_call_operand.vmem [shape: f32[1,8], index: 1, kind: input, shape index: {}]
  %s2 = inlined_call_operand.vmem [shape: f32[8,16], index: 2, kind: input, shape index: {}]
  %s3 = inlined_call_operand.hbm [shape: f32[1,1], index: 3, kind: output, shape index: {}]
  %s4 = sld [smem:[#allocation0]]
  $region30: #{tpu_custom_call.1} parent=0
    _
  %s6 = ssub.s32 1, %s4
  %s7 = scalar_select 0, %s6, %s4
  $region1: #{tpu_custom_call.1} parent=0
    #allocation3 [shape = 'u8[512]{0}', space=smem, size = 0x200, scoped, tag = 'output window, operand 0, single buffered']
    #allocation4 [shape = 's32[1]{0}', space=sflag, size = 0x4, scoped, tag = 'scoped memory for tpu_custom_call.1']
    %8 = vsyncpa [#allocation4], 0
    // Predicated region
    $region2: #{tpu_custom_call.1} parent=1 // pred_check
      _
    $region3: #{tpu_custom_call.1} parent=1 // pred_check_branch
      %10 = sbr.rel (0) target = $region5
    $region4: #{tpu_custom_call.1} parent=1 // pred_region
      _
    $region5: #{tpu_custom_call.1} parent=1 // pred_fallthru
      _
    // Predicated region
    $region6: #{tpu_custom_call.1} parent=1 // pred_check
      _
    $region7: #{tpu_custom_call.1} parent=1 // pred_check_branch
      %12 = sbr.rel (0) target = $region9
    $region8: #{tpu_custom_call.1} parent=1 // pred_region
      _
    $region9: #{tpu_custom_call.1} parent=1 // pred_fallthru
      _
    // Predicated region
    $region10: #{tpu_custom_call.1} parent=1 // pred_check
      _
    $region11: #{tpu_custom_call.1} parent=1 // pred_check_branch
      %14 = sbr.rel (0) target = $region13
    $region12: #{tpu_custom_call.1} parent=1 // pred_region
      _
    $region13: #{tpu_custom_call.1} parent=1 // pred_fallthru
      _
    %p15 = scmp.eq.s32.totalorder 0, 0
    // Predicated region
    $region14: #{tpu_custom_call.1} parent=1 // pred_check
      %p16 = pneg %p15
    $region15: #{tpu_custom_call.1} parent=1 // pred_check_branch
      %18 = sbr.rel (%p16) target = $region17
    $region16: #{tpu_custom_call.1} parent=1 // pred_region
      %vm19 = vcmask 64512
      %20 = vst.msk [vmem:[#allocation2] sm:$0xff] %vm19, 0.0
    $region17: #{tpu_custom_call.1} parent=1 // pred_fallthru
      _
    %v21 = vld [vmem:[%s2] sm:$0xff]
    %v22 = vmax.f32 %v21, 1e-06
    %v23 = vlog2.pop %v22
    %v24 = vmul.f32 %v23, 0.6931472
    %v25 = vld [vmem:[#allocation2] sm:$0xff]
    %vm26 = vcmask 130048
    %v28 = vsel %vm26, %v21, 0
    %v31 = vsel %vm26, %v24, 0
    %33 = vmatpush.xpose.msra.mxu0 0.0
    %34 = vmatpush.xpose.msra.mxu0 0.0
    %35 = vmatpush.xpose.msra.mxu0 0.0
    %36 = vmatpush.xpose.msra.mxu0 0.0
    %37 = vmatpush.xpose.msra.mxu0 0.0
    %38 = vmatpush.xpose.msra.mxu0 0.0
    %39 = vmatpush.xpose.msra.mxu0 0.0
    %40 = vmatpush.xpose.msra.mxu0 0.0
    %41 = vmatpush.xpose.msra.mxu0 0.0
    %42 = vmatpush.xpose.msra.mxu0 0.0
    %43 = vmatpush.xpose.msra.mxu0 0.0
    %44 = vmatpush.xpose.msra.mxu0 0.0
    %45 = vmatpush.xpose.msra.mxu0 0.0
    %46 = vmatpush.xpose.msra.mxu0 0.0
    %47 = vmatpush.xpose.msra.mxu0 0.0
    %48 = vmatpush.xpose.msra.mxu0 %v31
    %49 = vmatmul.f32.gmra.mxu0 %v28
    %v50 = vpop.f32.mrf.mxu0
    %v51 = vadd.f32 0.0, %v50
    %52 = vdwg.mxu0
    %v53 = vadd.f32 %v25, %v51
    %vm54 = vcmask 64512
    %55 = vst.msk [vmem:[#allocation2] sm:$0xff] %vm54, %v53
    // Predicated region
    $region18: #{tpu_custom_call.1} parent=1 // pred_check
      %p56 = pneg %p15
    $region19: #{tpu_custom_call.1} parent=1 // pred_check_branch
      %58 = sbr.rel (%p56) target = $region21
    $region20: #{tpu_custom_call.1} parent=1 // pred_region
      %v59 = vld [vmem:[#allocation2] sm:$0xff]
      %v60 = vlaneseq
      %v61 = vshrl.u32 %v60, 7
      %v62 = vlaneseq
      %v63 = vand.u32 %v62, 127
      %s64 = smul.u32 0, 8
      %v65 = vstv %s64
      %v66 = vadd.s32 %v61, %v65
      %vm67 = vcmp.eq.s32.totalorder %v63, %v66
      %v68 = vsel %vm67, %v59, 0.0
      %v69 = vsel %vm54, %v68, 0.0
      %70 = vadd.xlane.f32.xlu0 %v69
      %v71 = vpop.xlane.xlu0 %70
      %v72 = vsub.f32 %v71, %v59
      %v73 = vld [vmem:[%s0] sm:$0xff]
      %v74 = vld [vmem:[%s1] sm:$0x1]
      %76 = vset.pattern.permute.xlu0 0
      %77 = vperm.xlu0 %76, %v73
      %v78 = vpop.permute.xlu0 %77
      %v81 = vperm.slane %v74, 0
      %vm83 = vcmp.eq.f32.partialorder %v78, %v81
      %v84 = vsub.f32 2.0, %v72
      %v85 = vmax.f32 %v84, 0.0
      %v86 = vsel %vm83, %v72, %v85
      %v87 = vsel %vm54, %v86, 0.0
      %88 = vadd.xlane.f32.xlu0 %v87
      %v89 = vpop.xlane.xlu0 %88
      %v90 = vrot.slane %v89, 4
      %v91 = vadd.f32 %v89, %v90
      %v92 = vrot.slane %v91, 2
      %v93 = vadd.f32 %v91, %v92
      %v94 = vrot.slane %v93, 1
      %v95 = vadd.f32 %v93, %v94
      %s96 = vtos %v95
      %s97 = smul.f32 %s96, 0.035714287
      %s98 = scalar_lea.smem [#allocation3], 0
      %99 = sst [smem:[%s98]] %s97
    $region21: #{tpu_custom_call.1} parent=1 // pred_fallthru
      _
    // Predicated region
    $region22: #{tpu_custom_call.1} parent=1 // pred_check
      _
    $region23: #{tpu_custom_call.1} parent=1 // pred_check_branch
      %101 = sbr.rel (0) target = $region25
    $region24: #{tpu_custom_call.1} parent=1 // pred_region
      %103 = vsyncadd [#allocation4], 0
      %s105 = sshll.u32 %s3, 4
      %s106 = int_to_ptr.hbm [resolvable:$true] %s105
      %108 = dma.smem_to_hbm [#allocation3], 16, %s106, [#allocation4]
    $region25: #{tpu_custom_call.1} parent=1 // pred_fallthru
      _
    // Predicated region
    $region26: #{tpu_custom_call.1} parent=1 // pred_check
      _
    $region27: #{tpu_custom_call.1} parent=1 // pred_check_branch
      %110 = sbr.rel (0) target = $region29
    $region28: #{tpu_custom_call.1} parent=1 // pred_region
      %112 = dma.done [#allocation4], 16
    $region29: #{tpu_custom_call.1} parent=1 // pred_fallthru
      _
    %113 = sfence
    %114 = vsyncpa [#allocation4], 1

</llo_original>
